<compile_context>
chip_gen: v7x
topology: tpu7x:2x2x1
jax: 0.10.0
libtpu: 0.0.40
codegen_flags: <defaults>
</compile_context>

<pallas_src>
import functools

import jax
import jax.numpy as jnp
from jax.experimental import pallas as pl
from jax.experimental.pallas import tpu as pltpu

IN_DIM = 28 * 28   # 784
H1 = 128
H2 = 64
OUT = 10
H2_PAD = 128       # hidden 64 zero-padded to 128 lanes (math is exact)
OUT_PAD = 128      # output 10 zero-padded to 128 lanes (unmasked full-vreg stores)
ROW_ALIGN = 32     # batch-tile row alignment valid for f32 / bf16 / int8 tiling


def _round_up(x, m):
    return (x + m - 1) // m * m


def _default_tb():
    """Per-generation default batch tile (see header notes)."""
    try:
        kind = jax.devices()[0].device_kind.lower()
    except Exception:
        return 1024
    if "v6" in kind or "v7" in kind or "7x" in kind:
        return 2048   # fits v6e/v7x default scoped VMEM (32 MiB) without override
    return 1024       # v5e (16 MiB default scoped VMEM) and unknown chips


def _pick_tb(batch, tb_target):
    """Full-extent block for tiny batches (always a legal block shape), else a
    ROW_ALIGN-aligned tile capped so the grid keeps >= 2 steps (pipeline
    overlap + megacore sharding of the 'parallel' batch axis on v7x)."""
    if batch <= ROW_ALIGN:
        return batch
    tb = min(tb_target, _round_up(pl.cdiv(batch, 2), ROW_ALIGN))
    return max(tb, ROW_ALIGN)


def mlp_kernel(x_ref, w1_ref, b1_ref, w2_ref, b2_ref, w3_ref, b3_ref, o_ref):
    # x_ref: (TB, 784) producer dtype      w1: (784, 128) cdt    b1: (1, 128) f32
    # w2:    (128, 128) cdt (padded)       b2: (1, 128) f32 (padded)
    # w3:    (128, 128) cdt (padded)       b3: (1, 128) f32 (padded)
    # o_ref: (TB, 128) output dtype (lane-padded)
    cdt = w1_ref.dtype                       # MXU operand dtype (bf16 by default)
    x = x_ref[...].astype(cdt)               # in-kernel upcast: producer ships bf16/uint8

    h1 = jnp.dot(x, w1_ref[...], preferred_element_type=jnp.float32) + b1_ref[...]
    h1 = jnp.maximum(h1, 0.0)

    h2 = jnp.dot(h1.astype(cdt), w2_ref[...],
                 preferred_element_type=jnp.float32) + b2_ref[...]
    h2 = jnp.maximum(h2, 0.0)

    out = jnp.dot(h2.astype(cdt), w3_ref[...],
                  preferred_element_type=jnp.float32) + b3_ref[...]
    o_ref[...] = out.astype(o_ref.dtype)


def prepare_params(raw_params, compute_dtype=jnp.bfloat16, input_scale=1.0):
    """One-time pad + cast of the Linear weights, done OUTSIDE the per-call jit.
    `input_scale` (e.g. 1/255 for raw uint8 MNIST pixels) is folded into w1 so
    normalization costs nothing in the kernel."""
    w1, b1, w2, b2, w3, b3 = raw_params
    w1p = (w1 * input_scale).astype(compute_dtype)                       # (784, 128)
    w2p = jnp.zeros((H1, H2_PAD), compute_dtype).at[:, :H2].set(
        w2.astype(compute_dtype))                                        # (128, 128)
    w3p = jnp.zeros((H2_PAD, OUT_PAD), compute_dtype).at[:H2, :OUT].set(
        w3.astype(compute_dtype))                                        # (128, 128)
    b1p = b1.reshape(1, H1).astype(jnp.float32)
    b2p = jnp.zeros((1, H2_PAD), jnp.float32).at[:, :H2].set(b2.reshape(1, H2))
    b3p = jnp.zeros((1, OUT_PAD), jnp.float32).at[:, :OUT].set(b3.reshape(1, OUT))
    return (w1p, b1p, w2p, b2p, w3p, b3p)


@functools.partial(jax.jit, static_argnames=("out_dtype", "tb", "return_padded"))
def mlp_forward(x, prepped, out_dtype=None, tb=None, return_padded=False):
    """x: (B, 1, 28, 28) or (B, 784), any float/int dtype (no wrapper cast).
    Returns (B, 10) by default, or the lane-padded (B, 128) slab if
    return_padded=True (avoids the post-kernel slice for a fused consumer)."""
    w1p, b1p, w2p, b2p, w3p, b3p = prepped
    B = x.shape[0]
    x2d = x.reshape(B, IN_DIM)               # same as torch .view(-1, 784); NO dtype cast

    if out_dtype is not None:
        odt = jnp.dtype(out_dtype)
    else:
        odt = jnp.dtype(jnp.float32) if w1p.dtype == jnp.float32 else jnp.dtype(jnp.bfloat16)

    TB = _pick_tb(B, tb if tb is not None else _default_tb())
    grid = (pl.cdiv(B, TB),)                 # ragged last block: OOB writes masked by Pallas

    w_bytes = (w1p.size + w2p.size + w3p.size) * w1p.dtype.itemsize
    b_bytes = (b1p.size + b2p.size + b3p.size) * 4
    flops = 2 * B * (IN_DIM * H1 + H1 * H2_PAD + H2_PAD * OUT_PAD)
    bytes_accessed = (B * IN_DIM * x2d.dtype.itemsize      # x stream (dominant)
                      + B * OUT_PAD * odt.itemsize         # output slab
                      + w_bytes + b_bytes)

    resident = lambda i: (0, 0)   # constant index_map -> DMA'd once, VMEM-resident

    out = pl.pallas_call(
        mlp_kernel,
        out_shape=jax.ShapeDtypeStruct((B, OUT_PAD), odt),
        grid=grid,
        in_specs=[
            pl.BlockSpec((TB, IN_DIM), lambda i: (i, 0)),   # x, batch-tiled stream
            pl.BlockSpec((IN_DIM, H1), resident),           # w1
            pl.BlockSpec((1, H1), resident),                # b1
            pl.BlockSpec((H1, H2_PAD), resident),           # w2 (padded)
            pl.BlockSpec((1, H2_PAD), resident),            # b2 (padded)
            pl.BlockSpec((H2_PAD, OUT_PAD), resident),      # w3 (padded)
            pl.BlockSpec((1, OUT_PAD), resident),           # b3 (padded)
        ],
        out_specs=pl.BlockSpec((TB, OUT_PAD), lambda i: (i, 0)),
        compiler_params=pltpu.CompilerParams(
            dimension_semantics=("parallel",)),
        cost_estimate=pl.CostEstimate(
            flops=flops, transcendentals=0, bytes_accessed=bytes_accessed),
    )(x2d, w1p, b1p, w2p, b2p, w3p, b3p)

    if return_padded:
        return out                # (B, 128) lane-padded slab for a fused consumer
    return out[:, :OUT]


def init_params(key):
    """Deterministic init mimicking nn.Linear (uniform(-1/sqrt(fan_in), +))."""
    dims = [(IN_DIM, H1), (H1, H2), (H2, OUT)]
    params = []
    for i, (fan_in, fan_out) in enumerate(dims):
        kw, kb = jax.random.split(jax.random.fold_in(key, i))
        bound = 1.0 / (fan_in ** 0.5)
        # stored as (in, out) so the kernel does x @ W (torch keeps (out, in))
        w = jax.random.uniform(kw, (fan_in, fan_out), jnp.float32, -bound, bound)
        b = jax.random.uniform(kb, (1, fan_out), jnp.float32, -bound, bound)
        params += [w, b]
    return tuple(params)


def reference_forward(x, raw_params):
    w1, b1, w2, b2, w3, b3 = raw_params
    x = x.reshape(x.shape[0], -1).astype(jnp.float32)
    h1 = jnp.maximum(x @ w1 + b1, 0.0)
    h2 = jnp.maximum(h1 @ w2 + b2, 0.0)
    return h2 @ w3 + b3


if __name__ == "__main__":
    key = jax.random.PRNGKey(0)
    kx, kp = jax.random.split(key)
    raw = init_params(kp)

    # Pre-pad / pre-cast once (outside the per-call jit).
    prepped_f32 = prepare_params(raw, compute_dtype=jnp.float32)
    prepped_bf16 = prepare_params(raw, compute_dtype=jnp.bfloat16)

    # B=8: single full-extent block.  B=13 / B=48: >=2 grid steps with a ragged
    # last block, exercising the no-pad masked-write path.
    for B in (8, 13, 48):
        x = jax.random.normal(jax.random.fold_in(kx, B), (B, 1, 28, 28),
                              jnp.float32)   # NCHW like PyTorch
        ref = reference_forward(x, raw)

        # f32 weights + f32 producer: tight check against the pure-JAX reference.
        out_f32 = jax.block_until_ready(
            mlp_forward(x, prepped_f32, out_dtype=jnp.float32))
        assert out_f32.shape == (B, OUT)
        assert jnp.allclose(out_f32, ref, atol=5e-3, rtol=5e-3)

        # Perf path: producer ships bf16 x, bf16 MXU operands, bf16 output slab.
        x_bf16 = x.astype(jnp.bfloat16)      # producer-side narrowing (data pipeline)
        out_bf16 = jax.block_until_ready(mlp_forward(x_bf16, prepped_bf16))
        assert out_bf16.shape == (B, OUT)
        assert jnp.allclose(out_bf16.astype(jnp.float32), ref, atol=2e-1, rtol=5e-2)

        # Fused-consumer path: padded (B, 128) slab, no post-kernel lane slice.
        slab = jax.block_until_ready(
            mlp_forward(x_bf16, prepped_bf16, return_padded=True))
        assert slab.shape == (B, OUT_PAD)
        assert jnp.allclose(slab[:, :OUT].astype(jnp.float32), ref,
                            atol=2e-1, rtol=5e-2)

    print("KERNEL_OK")
</pallas_src>

<mosaic_0001>
module attributes {stable_mosaic.version = 11 : i64} {
  func.func @mlp_kernel(%arg0: i32, %arg1: memref<8x784xf32, #tpu.memory_space<vmem>>, %arg2: memref<784x128xf32, #tpu.memory_space<vmem>>, %arg3: memref<1x128xf32, #tpu.memory_space<vmem>>, %arg4: memref<128x128xf32, #tpu.memory_space<vmem>>, %arg5: memref<1x128xf32, #tpu.memory_space<vmem>>, %arg6: memref<128x128xf32, #tpu.memory_space<vmem>>, %arg7: memref<1x128xf32, #tpu.memory_space<vmem>>, %arg8: memref<8x128xf32, #tpu.memory_space<vmem>>) attributes {dimension_semantics = [#tpu.dimension_semantics<parallel>], iteration_bounds = array<i64: 1>, scalar_prefetch = 0 : i64, scratch_operands = 0 : i64, tpu.core_type = #tpu.core_type<tc>, window_params = [{transform_indices = @transform_0, window_bounds = array<i64: 8, 784>}, {pipeline_mode = #tpu.pipeline_mode<synchronous>, transform_indices = @transform_1, window_bounds = array<i64: 784, 128>}, {pipeline_mode = #tpu.pipeline_mode<synchronous>, transform_indices = @transform_2, window_bounds = array<i64: 1, 128>}, {pipeline_mode = #tpu.pipeline_mode<synchronous>, transform_indices = @transform_3, window_bounds = array<i64: 128, 128>}, {pipeline_mode = #tpu.pipeline_mode<synchronous>, transform_indices = @transform_4, window_bounds = array<i64: 1, 128>}, {pipeline_mode = #tpu.pipeline_mode<synchronous>, transform_indices = @transform_5, window_bounds = array<i64: 128, 128>}, {pipeline_mode = #tpu.pipeline_mode<synchronous>, transform_indices = @transform_6, window_bounds = array<i64: 1, 128>}, {transform_indices = @transform_7, window_bounds = array<i64: 8, 128>}]} {
    %c0 = arith.constant 0 : index
    %c0_0 = arith.constant 0 : index
    %0 = vector.load %arg1[%c0, %c0_0] : memref<8x784xf32, #tpu.memory_space<vmem>>, vector<8x784xf32>
    %c0_1 = arith.constant 0 : index
    %c0_2 = arith.constant 0 : index
    %1 = vector.load %arg2[%c0_1, %c0_2] : memref<784x128xf32, #tpu.memory_space<vmem>>, vector<784x128xf32>
    %cst = arith.constant dense<0.000000e+00> : vector<8x128xf32>
    %2 = tpu.matmul %0, %1, %cst {dimension_numbers = #tpu.dot_dimension_numbers<[1], [0], [0], [1], [0, 0, 1, 1], [], []>} : vector<8x784xf32>, vector<784x128xf32>, vector<8x128xf32> -> vector<8x128xf32>
    %c0_3 = arith.constant 0 : index
    %c0_4 = arith.constant 0 : index
    %3 = vector.load %arg3[%c0_3, %c0_4] : memref<1x128xf32, #tpu.memory_space<vmem>>, vector<1x128xf32>
    %4 = vector.broadcast %3 : vector<1x128xf32> to vector<8x128xf32>
    %5 = arith.addf %2, %4 : vector<8x128xf32>
    %cst_5 = arith.constant 0.000000e+00 : f32
    %6 = vector.broadcast %cst_5 : f32 to vector<8x128xf32>
    %7 = arith.maximumf %5, %6 : vector<8x128xf32>
    %c0_6 = arith.constant 0 : index
    %c0_7 = arith.constant 0 : index
    %8 = vector.load %arg4[%c0_6, %c0_7] : memref<128x128xf32, #tpu.memory_space<vmem>>, vector<128x128xf32>
    %cst_8 = arith.constant dense<0.000000e+00> : vector<8x128xf32>
    %9 = tpu.matmul %7, %8, %cst_8 {dimension_numbers = #tpu.dot_dimension_numbers<[1], [0], [0], [1], [0, 0, 1, 1], [], []>} : vector<8x128xf32>, vector<128x128xf32>, vector<8x128xf32> -> vector<8x128xf32>
    %c0_9 = arith.constant 0 : index
    %c0_10 = arith.constant 0 : index
    %10 = vector.load %arg5[%c0_9, %c0_10] : memref<1x128xf32, #tpu.memory_space<vmem>>, vector<1x128xf32>
    %11 = vector.broadcast %10 : vector<1x128xf32> to vector<8x128xf32>
    %12 = arith.addf %9, %11 : vector<8x128xf32>
    %cst_11 = arith.constant 0.000000e+00 : f32
    %13 = vector.broadcast %cst_11 : f32 to vector<8x128xf32>
    %14 = arith.maximumf %12, %13 : vector<8x128xf32>
    %c0_12 = arith.constant 0 : index
    %c0_13 = arith.constant 0 : index
    %15 = vector.load %arg6[%c0_12, %c0_13] : memref<128x128xf32, #tpu.memory_space<vmem>>, vector<128x128xf32>
    %cst_14 = arith.constant dense<0.000000e+00> : vector<8x128xf32>
    %16 = tpu.matmul %14, %15, %cst_14 {dimension_numbers = #tpu.dot_dimension_numbers<[1], [0], [0], [1], [0, 0, 1, 1], [], []>} : vector<8x128xf32>, vector<128x128xf32>, vector<8x128xf32> -> vector<8x128xf32>
    %c0_15 = arith.constant 0 : index
    %c0_16 = arith.constant 0 : index
    %17 = vector.load %arg7[%c0_15, %c0_16] : memref<1x128xf32, #tpu.memory_space<vmem>>, vector<1x128xf32>
    %18 = vector.broadcast %17 : vector<1x128xf32> to vector<8x128xf32>
    %19 = arith.addf %16, %18 : vector<8x128xf32>
    %c0_17 = arith.constant 0 : index
    %c0_18 = arith.constant 0 : index
    %20 = vector.load %arg8[%c0_17, %c0_18] : memref<8x128xf32, #tpu.memory_space<vmem>>, vector<8x128xf32>
    tpu.vector_store %arg8[%c0_17, %c0_18], %19 {strides = array<i32>} : memref<8x128xf32, #tpu.memory_space<vmem>>, vector<8x128xf32>,
    return
  }
  func.func @transform_0(%arg0: i32) -> (i32, i32) {
    %c0_i32 = arith.constant 0 : i32
    %c0_i32_0 = arith.constant 0 : i32
    return %arg0, %c0_i32 : i32, i32
  }
  func.func @transform_1(%arg0: i32) -> (i32, i32) {
    %c0_i32 = arith.constant 0 : i32
    %c0_i32_0 = arith.constant 0 : i32
    %c0_i32_1 = arith.constant 0 : i32
    return %c0_i32, %c0_i32_0 : i32, i32
  }
  func.func @transform_2(%arg0: i32) -> (i32, i32) {
    %c0_i32 = arith.constant 0 : i32
    %c0_i32_0 = arith.constant 0 : i32
    %c0_i32_1 = arith.constant 0 : i32
    return %c0_i32, %c0_i32_0 : i32, i32
  }
  func.func @transform_3(%arg0: i32) -> (i32, i32) {
    %c0_i32 = arith.constant 0 : i32
    %c0_i32_0 = arith.constant 0 : i32
    %c0_i32_1 = arith.constant 0 : i32
    return %c0_i32, %c0_i32_0 : i32, i32
  }
  func.func @transform_4(%arg0: i32) -> (i32, i32) {
    %c0_i32 = arith.constant 0 : i32
    %c0_i32_0 = arith.constant 0 : i32
    %c0_i32_1 = arith.constant 0 : i32
    return %c0_i32, %c0_i32_0 : i32, i32
  }
  func.func @transform_5(%arg0: i32) -> (i32, i32) {
    %c0_i32 = arith.constant 0 : i32
    %c0_i32_0 = arith.constant 0 : i32
    %c0_i32_1 = arith.constant 0 : i32
    return %c0_i32, %c0_i32_0 : i32, i32
  }
  func.func @transform_6(%arg0: i32) -> (i32, i32) {
    %c0_i32 = arith.constant 0 : i32
    %c0_i32_0 = arith.constant 0 : i32
    %c0_i32_1 = arith.constant 0 : i32
    return %c0_i32, %c0_i32_0 : i32, i32
  }
  func.func @transform_7(%arg0: i32) -> (i32, i32) {
    %c0_i32 = arith.constant 0 : i32
    %c0_i32_0 = arith.constant 0 : i32
    return %arg0, %c0_i32 : i32, i32
  }
}

</mosaic_0001>

<llo_original>
// kernel: mlp_forward.1
$region0: #{mlp_forward.1}
  #allocation0 [shape = 'u32[]', space=smem, size = 0x4, offset = 0x4, fixed_abs, tag = 'smem constant byte address 0x4 - core index']
  #allocation1 [shape = 'u32[144,128]{1,0:T(1,128)}', space=vmem, size = 0x12000, scoped, tag = 'internal scratch']
  %s0 = inlined_call_operand.vmem [shape: f32[8,784], index: 0, kind: input, shape index: {}]
  %s1 = inlined_call_operand.vmem [shape: f32[784,128], index: 1, kind: input, shape index: {}]
  %s2 = inlined_call_operand.vmem [shape: f32[1,128], index: 2, kind: input, shape index: {}]
  %s3 = inlined_call_operand.hbm [shape: f32[128,128], index: 3, kind: input, shape index: {}]
  %s4 = inlined_call_operand.vmem [shape: f32[1,128], index: 4, kind: input, shape index: {}]
  %s5 = inlined_call_operand.hbm [shape: f32[128,128], index: 5, kind: input, shape index: {}]
  %s6 = inlined_call_operand.vmem [shape: f32[1,128], index: 6, kind: input, shape index: {}]
  %s7 = inlined_call_operand.hbm [shape: f32[8,128], index: 7, kind: output, shape index: {}]
  %s8 = sld [smem:[#allocation0]]
  $region46: #{mlp_forward.1} parent=0
    _
  %s10 = ssub.s32 1, %s8
  %s11 = scalar_select 0, %s10, %s8
  $region1: #{mlp_forward.1} parent=0
    #allocation2 [shape = 'u8[65536]{0}', space=vmem, size = 0x10000, scoped, tag = 'input window, operand 3, single buffered']
    #allocation3 [shape = 's32[1]{0}', space=sflag, size = 0x4, scoped, tag = 'scoped memory for mlp_forward.1']
    #allocation4 [shape = 's32[1]{0}', space=sflag, size = 0x4, scoped, tag = 'scoped memory for mlp_forward.1']
    #allocation5 [shape = 'u8[65536]{0}', space=vmem, size = 0x10000, scoped, tag = 'input window, operand 5, single buffered']
    #allocation6 [shape = 's32[1]{0}', space=sflag, size = 0x4, scoped, tag = 'scoped memory for mlp_forward.1']
    #allocation7 [shape = 'u8[4096]{0}', space=vmem, size = 0x1000, scoped, tag = 'output window, operand 0, single buffered']
    %12 = vsyncpa [#allocation3], 0
    %13 = vsyncpa [#allocation6], 0
    %14 = vsyncpa [#allocation4], 0
    // Predicated region
    $region2: #{mlp_forward.1} parent=1 // pred_check
      _
    $region3: #{mlp_forward.1} parent=1 // pred_check_branch
      %16 = sbr.rel (0) target = $region5
    $region4: #{mlp_forward.1} parent=1 // pred_region
      _
    $region5: #{mlp_forward.1} parent=1 // pred_fallthru
      _
    // Predicated region
    $region6: #{mlp_forward.1} parent=1 // pred_check
      _
    $region7: #{mlp_forward.1} parent=1 // pred_check_branch
      %18 = sbr.rel (0) target = $region9
    $region8: #{mlp_forward.1} parent=1 // pred_region
      _
    $region9: #{mlp_forward.1} parent=1 // pred_fallthru
      _
    // Predicated region
    $region10: #{mlp_forward.1} parent=1 // pred_check
      _
    $region11: #{mlp_forward.1} parent=1 // pred_check_branch
      %20 = sbr.rel (0) target = $region13
    $region12: #{mlp_forward.1} parent=1 // pred_region
      _
    $region13: #{mlp_forward.1} parent=1 // pred_fallthru
      _
    // Predicated region
    $region14: #{mlp_forward.1} parent=1 // pred_check
      _
    $region15: #{mlp_forward.1} parent=1 // pred_check_branch
      %22 = sbr.rel (0) target = $region17
    $region16: #{mlp_forward.1} parent=1 // pred_region
      %s24 = ssub.s32 2048, 2048
      %25 = vsyncadd [#allocation3], %s24
      %s26 = sshll.u32 [#allocation2], 4
      %s27 = int_to_ptr.vmem [resolvable:$true] %s26
      %32 = dma.hbm_to_vmem [thread:$0]  %s3, 2048, %s27, [#allocation3], 128, 128, 8
    $region17: #{mlp_forward.1} parent=1 // pred_fallthru
      _
    // Predicated region
    $region18: #{mlp_forward.1} parent=1 // pred_check
      _
    $region19: #{mlp_forward.1} parent=1 // pred_check_branch
      %34 = sbr.rel (0) target = $region21
    $region20: #{mlp_forward.1} parent=1 // pred_region
      _
    $region21: #{mlp_forward.1} parent=1 // pred_fallthru
      _
    // Predicated region
    $region22: #{mlp_forward.1} parent=1 // pred_check
      _
    $region23: #{mlp_forward.1} parent=1 // pred_check_branch
      %36 = sbr.rel (0) target = $region25
    $region24: #{mlp_forward.1} parent=1 // pred_region
      %s38 = ssub.s32 2048, 2048
      %39 = vsyncadd [#allocation6], %s38
      %s40 = sshll.u32 [#allocation5], 4
      %s41 = int_to_ptr.vmem [resolvable:$true] %s40
      %46 = dma.hbm_to_vmem [thread:$0]  %s5, 2048, %s41, [#allocation6], 128, 128, 8
    $region25: #{mlp_forward.1} parent=1 // pred_fallthru
      _
    // Predicated region
    $region26: #{mlp_forward.1} parent=1 // pred_check
      _
    $region27: #{mlp_forward.1} parent=1 // pred_check_branch
      %48 = sbr.rel (0) target = $region29
    $region28: #{mlp_forward.1} parent=1 // pred_region
      _
    $region29: #{mlp_forward.1} parent=1 // pred_fallthru
      _
    // Predicated region
    $region30: #{mlp_forward.1} parent=1 // pred_check
      _
    $region31: #{mlp_forward.1} parent=1 // pred_check_branch
      %50 = sbr.rel (0) target = $region33
    $region32: #{mlp_forward.1} parent=1 // pred_region
      %51 = dma.done [#allocation3], 2048
    $region33: #{mlp_forward.1} parent=1 // pred_fallthru
      _
    // Predicated region
    $region34: #{mlp_forward.1} parent=1 // pred_check
      _
    $region35: #{mlp_forward.1} parent=1 // pred_check_branch
      %53 = sbr.rel (0) target = $region37
    $region36: #{mlp_forward.1} parent=1 // pred_region
      %54 = dma.done [#allocation6], 2048
    $region37: #{mlp_forward.1} parent=1 // pred_fallthru
      _
    %v55 = vld [vmem:[%s0] sm:$0xff]
    %v56 = vld [vmem:[%s0 + $0x8] sm:$0xff]
    %v57 = vld [vmem:[%s0 + $0x10] sm:$0xff]
    %v58 = vld [vmem:[%s0 + $0x18] sm:$0xff]
    %v59 = vld [vmem:[%s0 + $0x20] sm:$0xff]
    %v60 = vld [vmem:[%s0 + $0x28] sm:$0xff]
    %v61 = vld [vmem:[%s0 + $0x30] sm:$0xff]
    %v62 = vld [vmem:[%s1] sm:$0xff]
    %v63 = vld [vmem:[%s1 + $0x8] sm:$0xff]
    %v64 = vld [vmem:[%s1 + $0x10] sm:$0xff]
    %v65 = vld [vmem:[%s1 + $0x18] sm:$0xff]
    %v66 = vld [vmem:[%s1 + $0x20] sm:$0xff]
    %v67 = vld [vmem:[%s1 + $0x28] sm:$0xff]
    %v68 = vld [vmem:[%s1 + $0x30] sm:$0xff]
    %v69 = vld [vmem:[%s1 + $0x38] sm:$0xff]
    %v70 = vld [vmem:[%s1 + $0x40] sm:$0xff]
    %v71 = vld [vmem:[%s1 + $0x48] sm:$0xff]
    %v72 = vld [vmem:[%s1 + $0x50] sm:$0xff]
    %v73 = vld [vmem:[%s1 + $0x58] sm:$0xff]
    %v74 = vld [vmem:[%s1 + $0x60] sm:$0xff]
    %v75 = vld [vmem:[%s1 + $0x68] sm:$0xff]
    %v76 = vld [vmem:[%s1 + $0x70] sm:$0xff]
    %v77 = vld [vmem:[%s1 + $0x78] sm:$0xff]
    %v78 = vld [vmem:[%s1 + $0x80] sm:$0xff]
    %v79 = vld [vmem:[%s1 + $0x88] sm:$0xff]
    %v80 = vld [vmem:[%s1 + $0x90] sm:$0xff]
    %v81 = vld [vmem:[%s1 + $0x98] sm:$0xff]
    %v82 = vld [vmem:[%s1 + $0xa0] sm:$0xff]
    %v83 = vld [vmem:[%s1 + $0xa8] sm:$0xff]
    %v84 = vld [vmem:[%s1 + $0xb0] sm:$0xff]
    %v85 = vld [vmem:[%s1 + $0xb8] sm:$0xff]
    %v86 = vld [vmem:[%s1 + $0xc0] sm:$0xff]
    %v87 = vld [vmem:[%s1 + $0xc8] sm:$0xff]
    %v88 = vld [vmem:[%s1 + $0xd0] sm:$0xff]
    %v89 = vld [vmem:[%s1 + $0xd8] sm:$0xff]
    %v90 = vld [vmem:[%s1 + $0xe0] sm:$0xff]
    %v91 = vld [vmem:[%s1 + $0xe8] sm:$0xff]
    %v92 = vld [vmem:[%s1 + $0xf0] sm:$0xff]
    %v93 = vld [vmem:[%s1 + $0xf8] sm:$0xff]
    %v94 = vld [vmem:[%s1 + $0x100] sm:$0xff]
    %v95 = vld [vmem:[%s1 + $0x108] sm:$0xff]
    %v96 = vld [vmem:[%s1 + $0x110] sm:$0xff]
    %v97 = vld [vmem:[%s1 + $0x118] sm:$0xff]
    %v98 = vld [vmem:[%s1 + $0x120] sm:$0xff]
    %v99 = vld [vmem:[%s1 + $0x128] sm:$0xff]
    %v100 = vld [vmem:[%s1 + $0x130] sm:$0xff]
    %v101 = vld [vmem:[%s1 + $0x138] sm:$0xff]
    %v102 = vld [vmem:[%s1 + $0x140] sm:$0xff]
    %v103 = vld [vmem:[%s1 + $0x148] sm:$0xff]
    %v104 = vld [vmem:[%s1 + $0x150] sm:$0xff]
    %v105 = vld [vmem:[%s1 + $0x158] sm:$0xff]
    %v106 = vld [vmem:[%s1 + $0x160] sm:$0xff]
    %v107 = vld [vmem:[%s1 + $0x168] sm:$0xff]
    %v108 = vld [vmem:[%s1 + $0x170] sm:$0xff]
    %v109 = vld [vmem:[%s1 + $0x178] sm:$0xff]
    %v110 = vld [vmem:[%s1 + $0x180] sm:$0xff]
    %v111 = vld [vmem:[%s1 + $0x188] sm:$0xff]
    %v112 = vld [vmem:[%s1 + $0x190] sm:$0xff]
    %v113 = vld [vmem:[%s1 + $0x198] sm:$0xff]
    %v114 = vld [vmem:[%s1 + $0x1a0] sm:$0xff]
    %v115 = vld [vmem:[%s1 + $0x1a8] sm:$0xff]
    %v116 = vld [vmem:[%s1 + $0x1b0] sm:$0xff]
    %v117 = vld [vmem:[%s1 + $0x1b8] sm:$0xff]
    %v118 = vld [vmem:[%s1 + $0x1c0] sm:$0xff]
    %v119 = vld [vmem:[%s1 + $0x1c8] sm:$0xff]
    %v120 = vld [vmem:[%s1 + $0x1d0] sm:$0xff]
    %v121 = vld [vmem:[%s1 + $0x1d8] sm:$0xff]
    %v122 = vld [vmem:[%s1 + $0x1e0] sm:$0xff]
    %v123 = vld [vmem:[%s1 + $0x1e8] sm:$0xff]
    %v124 = vld [vmem:[%s1 + $0x1f0] sm:$0xff]
    %v125 = vld [vmem:[%s1 + $0x1f8] sm:$0xff]
    %v126 = vld [vmem:[%s1 + $0x200] sm:$0xff]
    %v127 = vld [vmem:[%s1 + $0x208] sm:$0xff]
    %v128 = vld [vmem:[%s1 + $0x210] sm:$0xff]
    %v129 = vld [vmem:[%s1 + $0x218] sm:$0xff]
    %v130 = vld [vmem:[%s1 + $0x220] sm:$0xff]
    %v131 = vld [vmem:[%s1 + $0x228] sm:$0xff]
    %v132 = vld [vmem:[%s1 + $0x230] sm:$0xff]
    %v133 = vld [vmem:[%s1 + $0x238] sm:$0xff]
    %v134 = vld [vmem:[%s1 + $0x240] sm:$0xff]
    %v135 = vld [vmem:[%s1 + $0x248] sm:$0xff]
    %v136 = vld [vmem:[%s1 + $0x250] sm:$0xff]
    %v137 = vld [vmem:[%s1 + $0x258] sm:$0xff]
    %v138 = vld [vmem:[%s1 + $0x260] sm:$0xff]
    %v139 = vld [vmem:[%s1 + $0x268] sm:$0xff]
    %v140 = vld [vmem:[%s1 + $0x270] sm:$0xff]
    %v141 = vld [vmem:[%s1 + $0x278] sm:$0xff]
    %v142 = vld [vmem:[%s1 + $0x280] sm:$0xff]
    %v143 = vld [vmem:[%s1 + $0x288] sm:$0xff]
    %v144 = vld [vmem:[%s1 + $0x290] sm:$0xff]
    %v145 = vld [vmem:[%s1 + $0x298] sm:$0xff]
    %v146 = vld [vmem:[%s1 + $0x2a0] sm:$0xff]
    %v147 = vld [vmem:[%s1 + $0x2a8] sm:$0xff]
    %v148 = vld [vmem:[%s1 + $0x2b0] sm:$0xff]
    %v149 = vld [vmem:[%s1 + $0x2b8] sm:$0xff]
    %v150 = vld [vmem:[%s1 + $0x2c0] sm:$0xff]
    %v151 = vld [vmem:[%s1 + $0x2c8] sm:$0xff]
    %v152 = vld [vmem:[%s1 + $0x2d0] sm:$0xff]
    %v153 = vld [vmem:[%s1 + $0x2d8] sm:$0xff]
    %v154 = vld [vmem:[%s1 + $0x2e0] sm:$0xff]
    %v155 = vld [vmem:[%s1 + $0x2e8] sm:$0xff]
    %v156 = vld [vmem:[%s1 + $0x2f0] sm:$0xff]
    %v157 = vld [vmem:[%s1 + $0x2f8] sm:$0xff]
    %v158 = vld [vmem:[%s1 + $0x300] sm:$0xff]
    %v159 = vld [vmem:[%s1 + $0x308] sm:$0xff]
    %v160 = vld [vmem:[%s2] sm:$0x1]
    %v162 = vlaneseq
    %v163 = vshrl.u32 %v162, 7
    %v164 = vsub.s32 0, %v163
    %v165 = vrot.slane %v160, %v164
    %vm167 = vcmask 130048
    %v169 = vsel %vm167, %v61, 0
    %171 = vmatprep.subr.mxu0 0.0
    %172 = vmatpush1.msra.mxu0 %v62
    %173 = vmatprep.subr.mxu0 0.0
    %174 = vmatpush1.msra.mxu0 %v63
    %175 = vmatprep.subr.mxu0 0.0
    %176 = vmatpush1.msra.mxu0 %v64
    %177 = vmatprep.subr.mxu0 0.0
    %178 = vmatpush1.msra.mxu0 %v65
    %179 = vmatprep.subr.mxu0 0.0
    %180 = vmatpush1.msra.mxu0 %v66
    %181 = vmatprep.subr.mxu0 0.0
    %182 = vmatpush1.msra.mxu0 %v67
    %183 = vmatprep.subr.mxu0 0.0
    %184 = vmatpush1.msra.mxu0 %v68
    %185 = vmatprep.subr.mxu0 0.0
    %186 = vmatpush1.msra.mxu0 %v69
    %187 = vmatprep.subr.mxu0 0.0
    %188 = vmatpush1.msra.mxu0 %v70
    %189 = vmatprep.subr.mxu0 0.0
    %190 = vmatpush1.msra.mxu0 %v71
    %191 = vmatprep.subr.mxu0 0.0
    %192 = vmatpush1.msra.mxu0 %v72
    %193 = vmatprep.subr.mxu0 0.0
    %194 = vmatpush1.msra.mxu0 %v73
    %195 = vmatprep.subr.mxu0 0.0
    %196 = vmatpush1.msra.mxu0 %v74
    %197 = vmatprep.subr.mxu0 0.0
    %198 = vmatpush1.msra.mxu0 %v75
    %199 = vmatprep.subr.mxu0 0.0
    %200 = vmatpush1.msra.mxu0 %v76
    %201 = vmatprep.subr.mxu0 0.0
    %202 = vmatpush1.msra.mxu0 %v77
    %203 = vmatprep.subr.mxu0 0.0
    %204 = vmatpush1.msra.mxu0 %v78
    %205 = vmatprep.subr.mxu0 0.0
    %206 = vmatpush1.msra.mxu0 %v79
    %207 = vmatprep.subr.mxu0 0.0
    %208 = vmatpush1.msra.mxu0 %v80
    %209 = vmatprep.subr.mxu0 0.0
    %210 = vmatpush1.msra.mxu0 %v81
    %211 = vmatprep.subr.mxu0 0.0
    %212 = vmatpush1.msra.mxu0 %v82
    %213 = vmatprep.subr.mxu0 0.0
    %214 = vmatpush1.msra.mxu0 %v83
    %215 = vmatprep.subr.mxu0 0.0
    %216 = vmatpush1.msra.mxu0 %v84
    %217 = vmatprep.subr.mxu0 0.0
    %218 = vmatpush1.msra.mxu0 %v85
    %219 = vmatprep.subr.mxu0 0.0
    %220 = vmatpush1.msra.mxu0 %v86
    %221 = vmatprep.subr.mxu0 0.0
    %222 = vmatpush1.msra.mxu0 %v87
    %223 = vmatprep.subr.mxu0 0.0
    %224 = vmatpush1.msra.mxu0 %v88
    %225 = vmatprep.subr.mxu0 0.0
    %226 = vmatpush1.msra.mxu0 %v89
    %227 = vmatprep.subr.mxu0 0.0
    %228 = vmatpush1.msra.mxu0 %v90
    %229 = vmatprep.subr.mxu0 0.0
    %230 = vmatpush1.msra.mxu0 %v91
    %231 = vmatprep.subr.mxu0 0.0
    %232 = vmatpush1.msra.mxu0 %v92
    %233 = vmatprep.subr.mxu0 0.0
    %234 = vmatpush1.msra.mxu0 %v93
    %235 = vmatprep.mubr.f32.mxu0 %v56
    %236 = vmatmul.mubr.f32.gmra.mrb[0].mxu0 %v55
    %v237 = vpop.f32.mrb[0].mxu0
    %v238 = vadd.f32 %v165, %v237
    %v239 = vpop.f32.mrb[0].mxu0
    %240 = vdwg.mxu0
    %241 = vmatprep.subr.mxu0 0.0
    %242 = vmatpush1.msra.mxu0 %v94
    %243 = vmatprep.subr.mxu0 0.0
    %244 = vmatpush1.msra.mxu0 %v95
    %245 = vmatprep.subr.mxu0 0.0
    %246 = vmatpush1.msra.mxu0 %v96
    %247 = vmatprep.subr.mxu0 0.0
    %248 = vmatpush1.msra.mxu0 %v97
    %249 = vmatprep.subr.mxu0 0.0
    %250 = vmatpush1.msra.mxu0 %v98
    %251 = vmatprep.subr.mxu0 0.0
    %252 = vmatpush1.msra.mxu0 %v99
    %253 = vmatprep.subr.mxu0 0.0
    %254 = vmatpush1.msra.mxu0 %v100
    %255 = vmatprep.subr.mxu0 0.0
    %256 = vmatpush1.msra.mxu0 %v101
    %257 = vmatprep.subr.mxu0 0.0
    %258 = vmatpush1.msra.mxu0 %v102
    %259 = vmatprep.subr.mxu0 0.0
    %260 = vmatpush1.msra.mxu0 %v103
    %261 = vmatprep.subr.mxu0 0.0
    %262 = vmatpush1.msra.mxu0 %v104
    %263 = vmatprep.subr.mxu0 0.0
    %264 = vmatpush1.msra.mxu0 %v105
    %265 = vmatprep.subr.mxu0 0.0
    %266 = vmatpush1.msra.mxu0 %v106
    %267 = vmatprep.subr.mxu0 0.0
    %268 = vmatpush1.msra.mxu0 %v107
    %269 = vmatprep.subr.mxu0 0.0
    %270 = vmatpush1.msra.mxu0 %v108
    %271 = vmatprep.subr.mxu0 0.0
    %272 = vmatpush1.msra.mxu0 %v109
    %273 = vmatprep.subr.mxu0 0.0
    %274 = vmatpush1.msra.mxu0 %v110
    %275 = vmatprep.subr.mxu0 0.0
    %276 = vmatpush1.msra.mxu0 %v111
    %277 = vmatprep.subr.mxu0 0.0
    %278 = vmatpush1.msra.mxu0 %v112
    %279 = vmatprep.subr.mxu0 0.0
    %280 = vmatpush1.msra.mxu0 %v113
    %281 = vmatprep.subr.mxu0 0.0
    %282 = vmatpush1.msra.mxu0 %v114
    %283 = vmatprep.subr.mxu0 0.0
    %284 = vmatpush1.msra.mxu0 %v115
    %285 = vmatprep.subr.mxu0 0.0
    %286 = vmatpush1.msra.mxu0 %v116
    %287 = vmatprep.subr.mxu0 0.0
    %288 = vmatpush1.msra.mxu0 %v117
    %289 = vmatprep.subr.mxu0 0.0
    %290 = vmatpush1.msra.mxu0 %v118
    %291 = vmatprep.subr.mxu0 0.0
    %292 = vmatpush1.msra.mxu0 %v119
    %293 = vmatprep.subr.mxu0 0.0
    %294 = vmatpush1.msra.mxu0 %v120
    %295 = vmatprep.subr.mxu0 0.0
    %296 = vmatpush1.msra.mxu0 %v121
    %297 = vmatprep.subr.mxu0 0.0
    %298 = vmatpush1.msra.mxu0 %v122
    %299 = vmatprep.subr.mxu0 0.0
    %300 = vmatpush1.msra.mxu0 %v123
    %301 = vmatprep.subr.mxu0 0.0
    %302 = vmatpush1.msra.mxu0 %v124
    %303 = vmatprep.subr.mxu0 0.0
    %304 = vmatpush1.msra.mxu0 %v125
    %305 = vmatprep.mubr.f32.mxu0 %v58
    %306 = vmatmul.mubr.f32.gmra.mrb[0].mxu0 %v57
    %v307 = vpop.f32.mrb[0].mxu0
    %v308 = vadd.f32 %v238, %v307
    %v309 = vpop.f32.mrb[0].mxu0
    %310 = vdwg.mxu0
    %311 = vmatprep.subr.mxu0 0.0
    %312 = vmatpush1.msra.mxu0 %v126
    %313 = vmatprep.subr.mxu0 0.0
    %314 = vmatpush1.msra.mxu0 %v127
    %315 = vmatprep.subr.mxu0 0.0
    %316 = vmatpush1.msra.mxu0 %v128
    %317 = vmatprep.subr.mxu0 0.0
    %318 = vmatpush1.msra.mxu0 %v129
    %319 = vmatprep.subr.mxu0 0.0
    %320 = vmatpush1.msra.mxu0 %v130
    %321 = vmatprep.subr.mxu0 0.0
    %322 = vmatpush1.msra.mxu0 %v131
    %323 = vmatprep.subr.mxu0 0.0
    %324 = vmatpush1.msra.mxu0 %v132
    %325 = vmatprep.subr.mxu0 0.0
    %326 = vmatpush1.msra.mxu0 %v133
    %327 = vmatprep.subr.mxu0 0.0
    %328 = vmatpush1.msra.mxu0 %v134
    %329 = vmatprep.subr.mxu0 0.0
    %330 = vmatpush1.msra.mxu0 %v135
    %331 = vmatprep.subr.mxu0 0.0
    %332 = vmatpush1.msra.mxu0 %v136
    %333 = vmatprep.subr.mxu0 0.0
    %334 = vmatpush1.msra.mxu0 %v137
    %335 = vmatprep.subr.mxu0 0.0
    %336 = vmatpush1.msra.mxu0 %v138
    %337 = vmatprep.subr.mxu0 0.0
    %338 = vmatpush1.msra.mxu0 %v139
    %339 = vmatprep.subr.mxu0 0.0
    %340 = vmatpush1.msra.mxu0 %v140
    %341 = vmatprep.subr.mxu0 0.0
    %342 = vmatpush1.msra.mxu0 %v141
    %343 = vmatprep.subr.mxu0 0.0
    %344 = vmatpush1.msra.mxu0 %v142
    %345 = vmatprep.subr.mxu0 0.0
    %346 = vmatpush1.msra.mxu0 %v143
    %347 = vmatprep.subr.mxu0 0.0
    %348 = vmatpush1.msra.mxu0 %v144
    %349 = vmatprep.subr.mxu0 0.0
    %350 = vmatpush1.msra.mxu0 %v145
    %351 = vmatprep.subr.mxu0 0.0
    %352 = vmatpush1.msra.mxu0 %v146
    %353 = vmatprep.subr.mxu0 0.0
    %354 = vmatpush1.msra.mxu0 %v147
    %355 = vmatprep.subr.mxu0 0.0
    %356 = vmatpush1.msra.mxu0 %v148
    %357 = vmatprep.subr.mxu0 0.0
    %358 = vmatpush1.msra.mxu0 %v149
    %359 = vmatprep.subr.mxu0 0.0
    %360 = vmatpush1.msra.mxu0 %v150
    %361 = vmatprep.subr.mxu0 0.0
    %362 = vmatpush1.msra.mxu0 %v151
    %363 = vmatprep.subr.mxu0 0.0
    %364 = vmatpush1.msra.mxu0 %v152
    %365 = vmatprep.subr.mxu0 0.0
    %366 = vmatpush1.msra.mxu0 %v153
    %367 = vmatprep.subr.mxu0 0.0
    %368 = vmatpush1.msra.mxu0 %v154
    %369 = vmatprep.subr.mxu0 0.0
    %370 = vmatpush1.msra.mxu0 %v155
    %371 = vmatprep.subr.mxu0 0.0
    %372 = vmatpush1.msra.mxu0 %v156
    %373 = vmatprep.subr.mxu0 0.0
    %374 = vmatpush1.msra.mxu0 %v157
    %375 = vmatprep.mubr.f32.mxu0 %v60
    %376 = vmatmul.mubr.f32.gmra.mrb[0].mxu0 %v59
    %v377 = vpop.f32.mrb[0].mxu0
    %v378 = vadd.f32 %v308, %v377
    %v379 = vpop.f32.mrb[0].mxu0
    %380 = vdwg.mxu0
    %381 = vmatprep.subr.mxu0 0.0
    %382 = vmatpush1.msra.mxu0 %v158
    %383 = vmatprep.subr.mxu0 0.0
    %384 = vmatpush1.msra.mxu0 %v159
    %385 = vmatprep.subr.mxu0 0.0
    %386 = vmatpush1.msra.mxu0 0.0
    %387 = vmatprep.subr.mxu0 0.0
    %388 = vmatpush1.msra.mxu0 0.0
    %389 = vmatprep.subr.mxu0 0.0
    %390 = vmatpush1.msra.mxu0 0.0
    %391 = vmatprep.subr.mxu0 0.0
    %392 = vmatpush1.msra.mxu0 0.0
    %393 = vmatprep.subr.mxu0 0.0
    %394 = vmatpush1.msra.mxu0 0.0
    %395 = vmatprep.subr.mxu0 0.0
    %396 = vmatpush1.msra.mxu0 0.0
    %397 = vmatprep.subr.mxu0 0.0
    %398 = vmatpush1.msra.mxu0 0.0
    %399 = vmatprep.subr.mxu0 0.0
    %400 = vmatpush1.msra.mxu0 0.0
    %401 = vmatprep.subr.mxu0 0.0
    %402 = vmatpush1.msra.mxu0 0.0
    %403 = vmatprep.subr.mxu0 0.0
    %404 = vmatpush1.msra.mxu0 0.0
    %405 = vmatprep.subr.mxu0 0.0
    %406 = vmatpush1.msra.mxu0 0.0
    %407 = vmatprep.subr.mxu0 0.0
    %408 = vmatpush1.msra.mxu0 0.0
    %409 = vmatprep.subr.mxu0 0.0
    %410 = vmatpush1.msra.mxu0 0.0
    %411 = vmatprep.subr.mxu0 0.0
    %412 = vmatpush1.msra.mxu0 0.0
    %413 = vmatprep.subr.mxu0 0.0
    %414 = vmatpush1.msra.mxu0 0.0
    %415 = vmatprep.subr.mxu0 0.0
    %416 = vmatpush1.msra.mxu0 0.0
    %417 = vmatprep.subr.mxu0 0.0
    %418 = vmatpush1.msra.mxu0 0.0
    %419 = vmatprep.subr.mxu0 0.0
    %420 = vmatpush1.msra.mxu0 0.0
    %421 = vmatprep.subr.mxu0 0.0
    %422 = vmatpush1.msra.mxu0 0.0
    %423 = vmatprep.subr.mxu0 0.0
    %424 = vmatpush1.msra.mxu0 0.0
    %425 = vmatprep.subr.mxu0 0.0
    %426 = vmatpush1.msra.mxu0 0.0
    %427 = vmatprep.subr.mxu0 0.0
    %428 = vmatpush1.msra.mxu0 0.0
    %429 = vmatprep.subr.mxu0 0.0
    %430 = vmatpush1.msra.mxu0 0.0
    %431 = vmatprep.subr.mxu0 0.0
    %432 = vmatpush1.msra.mxu0 0.0
    %433 = vmatprep.subr.mxu0 0.0
    %434 = vmatpush1.msra.mxu0 0.0
    %435 = vmatprep.subr.mxu0 0.0
    %436 = vmatpush1.msra.mxu0 0.0
    %437 = vmatprep.subr.mxu0 0.0
    %438 = vmatpush1.msra.mxu0 0.0
    %439 = vmatprep.subr.mxu0 0.0
    %440 = vmatpush1.msra.mxu0 0.0
    %441 = vmatprep.subr.mxu0 0.0
    %442 = vmatpush1.msra.mxu0 0.0
    %443 = vmatprep.subr.mxu0 0.0
    %444 = vmatpush1.msra.mxu0 0.0
    %445 = vmatprep.mubr.f32.mxu0 0.0
    %446 = vmatmul.mubr.f32.gmra.mrb[0].mxu0 %v169
    %v447 = vpop.f32.mrb[0].mxu0
    %v448 = vadd.f32 %v378, %v447
    %v449 = vpop.f32.mrb[0].mxu0
    %450 = vdwg.mxu0
    %v451 = vmax.f32 %v448, 0.0
    %v452 = vld [vmem:[#allocation2] sm:$0xff]
    %v453 = vld [vmem:[#allocation2 + $0x8] sm:$0xff]
    %v454 = vld [vmem:[#allocation2 + $0x10] sm:$0xff]
    %v455 = vld [vmem:[#allocation2 + $0x18] sm:$0xff]
    %v456 = vld [vmem:[#allocation2 + $0x20] sm:$0xff]
    %v457 = vld [vmem:[#allocation2 + $0x28] sm:$0xff]
    %v458 = vld [vmem:[#allocation2 + $0x30] sm:$0xff]
    %v459 = vld [vmem:[#allocation2 + $0x38] sm:$0xff]
    %v460 = vld [vmem:[#allocation2 + $0x40] sm:$0xff]
    %v461 = vld [vmem:[#allocation2 + $0x48] sm:$0xff]
    %v462 = vld [vmem:[#allocation2 + $0x50] sm:$0xff]
    %v463 = vld [vmem:[#allocation2 + $0x58] sm:$0xff]
    %v464 = vld [vmem:[#allocation2 + $0x60] sm:$0xff]
    %v465 = vld [vmem:[#allocation2 + $0x68] sm:$0xff]
    %v466 = vld [vmem:[#allocation2 + $0x70] sm:$0xff]
    %v467 = vld [vmem:[#allocation2 + $0x78] sm:$0xff]
    %v468 = vld [vmem:[%s4] sm:$0x1]
    %v470 = vlaneseq
    %v471 = vshrl.u32 %v470, 7
    %v472 = vsub.s32 0, %v471
    %v473 = vrot.slane %v468, %v472
    %475 = vmatprep.subr.mxu0 0.0
    %476 = vmatpush1.msra.mxu0 %v452
    %477 = vmatprep.subr.mxu0 0.0
    %478 = vmatpush1.msra.mxu0 %v453
    %479 = vmatprep.subr.mxu0 0.0
    %480 = vmatpush1.msra.mxu0 %v454
    %481 = vmatprep.subr.mxu0 0.0
    %482 = vmatpush1.msra.mxu0 %v455
    %483 = vmatprep.subr.mxu0 0.0
    %484 = vmatpush1.msra.mxu0 %v456
    %485 = vmatprep.subr.mxu0 0.0
    %486 = vmatpush1.msra.mxu0 %v457
    %487 = vmatprep.subr.mxu0 0.0
    %488 = vmatpush1.msra.mxu0 %v458
    %489 = vmatprep.subr.mxu0 0.0
    %490 = vmatpush1.msra.mxu0 %v459
    %491 = vmatprep.subr.mxu0 0.0
    %492 = vmatpush1.msra.mxu0 %v460
    %493 = vmatprep.subr.mxu0 0.0
    %494 = vmatpush1.msra.mxu0 %v461
    %495 = vmatprep.subr.mxu0 0.0
    %496 = vmatpush1.msra.mxu0 %v462
    %497 = vmatprep.subr.mxu0 0.0
    %498 = vmatpush1.msra.mxu0 %v463
    %499 = vmatprep.subr.mxu0 0.0
    %500 = vmatpush1.msra.mxu0 %v464
    %501 = vmatprep.subr.mxu0 0.0
    %502 = vmatpush1.msra.mxu0 %v465
    %503 = vmatprep.subr.mxu0 0.0
    %504 = vmatpush1.msra.mxu0 %v466
    %505 = vmatprep.subr.mxu0 0.0
    %506 = vmatpush1.msra.mxu0 %v467
    %507 = vmatprep.subr.mxu0 0.0
    %508 = vmatpush1.msra.mxu0 0.0
    %509 = vmatprep.subr.mxu0 0.0
    %510 = vmatpush1.msra.mxu0 0.0
    %511 = vmatprep.subr.mxu0 0.0
    %512 = vmatpush1.msra.mxu0 0.0
    %513 = vmatprep.subr.mxu0 0.0
    %514 = vmatpush1.msra.mxu0 0.0
    %515 = vmatprep.subr.mxu0 0.0
    %516 = vmatpush1.msra.mxu0 0.0
    %517 = vmatprep.subr.mxu0 0.0
    %518 = vmatpush1.msra.mxu0 0.0
    %519 = vmatprep.subr.mxu0 0.0
    %520 = vmatpush1.msra.mxu0 0.0
    %521 = vmatprep.subr.mxu0 0.0
    %522 = vmatpush1.msra.mxu0 0.0
    %523 = vmatprep.subr.mxu0 0.0
    %524 = vmatpush1.msra.mxu0 0.0
    %525 = vmatprep.subr.mxu0 0.0
    %526 = vmatpush1.msra.mxu0 0.0
    %527 = vmatprep.subr.mxu0 0.0
    %528 = vmatpush1.msra.mxu0 0.0
    %529 = vmatprep.subr.mxu0 0.0
    %530 = vmatpush1.msra.mxu0 0.0
    %531 = vmatprep.subr.mxu0 0.0
    %532 = vmatpush1.msra.mxu0 0.0
    %533 = vmatprep.subr.mxu0 0.0
    %534 = vmatpush1.msra.mxu0 0.0
    %535 = vmatprep.subr.mxu0 0.0
    %536 = vmatpush1.msra.mxu0 0.0
    %537 = vmatprep.subr.mxu0 0.0
    %538 = vmatpush1.msra.mxu0 0.0
    %539 = vmatprep.mubr.f32.mxu0 0.0
    %540 = vmatmul.mubr.f32.gmra.mrb[0].mxu0 %v451
    %v541 = vpop.f32.mrb[0].mxu0
    %v542 = vadd.f32 %v473, %v541
    %v543 = vpop.f32.mrb[0].mxu0
    %544 = vdwg.mxu0
    %v545 = vmax.f32 %v542, 0.0
    %v546 = vld [vmem:[#allocation5] sm:$0xff]
    %v547 = vld [vmem:[#allocation5 + $0x8] sm:$0xff]
    %v548 = vld [vmem:[#allocation5 + $0x10] sm:$0xff]
    %v549 = vld [vmem:[#allocation5 + $0x18] sm:$0xff]
    %v550 = vld [vmem:[#allocation5 + $0x20] sm:$0xff]
    %v551 = vld [vmem:[#allocation5 + $0x28] sm:$0xff]
    %v552 = vld [vmem:[#allocation5 + $0x30] sm:$0xff]
    %v553 = vld [vmem:[#allocation5 + $0x38] sm:$0xff]
    %v554 = vld [vmem:[#allocation5 + $0x40] sm:$0xff]
    %v555 = vld [vmem:[#allocation5 + $0x48] sm:$0xff]
    %v556 = vld [vmem:[#allocation5 + $0x50] sm:$0xff]
    %v557 = vld [vmem:[#allocation5 + $0x58] sm:$0xff]
    %v558 = vld [vmem:[#allocation5 + $0x60] sm:$0xff]
    %v559 = vld [vmem:[#allocation5 + $0x68] sm:$0xff]
    %v560 = vld [vmem:[#allocation5 + $0x70] sm:$0xff]
    %v561 = vld [vmem:[#allocation5 + $0x78] sm:$0xff]
    %v562 = vld [vmem:[%s6] sm:$0x1]
    %v564 = vlaneseq
    %v565 = vshrl.u32 %v564, 7
    %v566 = vsub.s32 0, %v565
    %v567 = vrot.slane %v562, %v566
    %569 = vmatprep.subr.mxu0 0.0
    %570 = vmatpush1.msra.mxu0 %v546
    %571 = vmatprep.subr.mxu0 0.0
    %572 = vmatpush1.msra.mxu0 %v547
    %573 = vmatprep.subr.mxu0 0.0
    %574 = vmatpush1.msra.mxu0 %v548
    %575 = vmatprep.subr.mxu0 0.0
    %576 = vmatpush1.msra.mxu0 %v549
    %577 = vmatprep.subr.mxu0 0.0
    %578 = vmatpush1.msra.mxu0 %v550
    %579 = vmatprep.subr.mxu0 0.0
    %580 = vmatpush1.msra.mxu0 %v551
    %581 = vmatprep.subr.mxu0 0.0
    %582 = vmatpush1.msra.mxu0 %v552
    %583 = vmatprep.subr.mxu0 0.0
    %584 = vmatpush1.msra.mxu0 %v553
    %585 = vmatprep.subr.mxu0 0.0
    %586 = vmatpush1.msra.mxu0 %v554
    %587 = vmatprep.subr.mxu0 0.0
    %588 = vmatpush1.msra.mxu0 %v555
    %589 = vmatprep.subr.mxu0 0.0
    %590 = vmatpush1.msra.mxu0 %v556
    %591 = vmatprep.subr.mxu0 0.0
    %592 = vmatpush1.msra.mxu0 %v557
    %593 = vmatprep.subr.mxu0 0.0
    %594 = vmatpush1.msra.mxu0 %v558
    %595 = vmatprep.subr.mxu0 0.0
    %596 = vmatpush1.msra.mxu0 %v559
    %597 = vmatprep.subr.mxu0 0.0
    %598 = vmatpush1.msra.mxu0 %v560
    %599 = vmatprep.subr.mxu0 0.0
    %600 = vmatpush1.msra.mxu0 %v561
    %601 = vmatprep.subr.mxu0 0.0
    %602 = vmatpush1.msra.mxu0 0.0
    %603 = vmatprep.subr.mxu0 0.0
    %604 = vmatpush1.msra.mxu0 0.0
    %605 = vmatprep.subr.mxu0 0.0
    %606 = vmatpush1.msra.mxu0 0.0
    %607 = vmatprep.subr.mxu0 0.0
    %608 = vmatpush1.msra.mxu0 0.0
    %609 = vmatprep.subr.mxu0 0.0
    %610 = vmatpush1.msra.mxu0 0.0
    %611 = vmatprep.subr.mxu0 0.0
    %612 = vmatpush1.msra.mxu0 0.0
    %613 = vmatprep.subr.mxu0 0.0
    %614 = vmatpush1.msra.mxu0 0.0
    %615 = vmatprep.subr.mxu0 0.0
    %616 = vmatpush1.msra.mxu0 0.0
    %617 = vmatprep.subr.mxu0 0.0
    %618 = vmatpush1.msra.mxu0 0.0
    %619 = vmatprep.subr.mxu0 0.0
    %620 = vmatpush1.msra.mxu0 0.0
    %621 = vmatprep.subr.mxu0 0.0
    %622 = vmatpush1.msra.mxu0 0.0
    %623 = vmatprep.subr.mxu0 0.0
    %624 = vmatpush1.msra.mxu0 0.0
    %625 = vmatprep.subr.mxu0 0.0
    %626 = vmatpush1.msra.mxu0 0.0
    %627 = vmatprep.subr.mxu0 0.0
    %628 = vmatpush1.msra.mxu0 0.0
    %629 = vmatprep.subr.mxu0 0.0
    %630 = vmatpush1.msra.mxu0 0.0
    %631 = vmatprep.subr.mxu0 0.0
    %632 = vmatpush1.msra.mxu0 0.0
    %633 = vmatprep.mubr.f32.mxu0 0.0
    %634 = vmatmul.mubr.f32.gmra.mrb[0].mxu0 %v545
    %v635 = vpop.f32.mrb[0].mxu0
    %v636 = vadd.f32 %v567, %v635
    %v637 = vpop.f32.mrb[0].mxu0
    %638 = vdwg.mxu0
    %639 = vst [vmem:[#allocation7] sm:$0xff] %v636
    // Predicated region
    $region38: #{mlp_forward.1} parent=1 // pred_check
      _
    $region39: #{mlp_forward.1} parent=1 // pred_check_branch
      %641 = sbr.rel (0) target = $region41
    $region40: #{mlp_forward.1} parent=1 // pred_region
      %s643 = ssub.s32 128, 128
      %644 = vsyncadd [#allocation4], %s643
      %s646 = sshll.u32 [#allocation7], 4
      %s647 = int_to_ptr.vmem [resolvable:$true] %s646
      %649 = dma.vmem_to_hbm [thread:$0]  %s647, 128, %s7, [#allocation4]
    $region41: #{mlp_forward.1} parent=1 // pred_fallthru
      _
    // Predicated region
    $region42: #{mlp_forward.1} parent=1 // pred_check
      _
    $region43: #{mlp_forward.1} parent=1 // pred_check_branch
      %651 = sbr.rel (0) target = $region45
    $region44: #{mlp_forward.1} parent=1 // pred_region
      %652 = dma.done [#allocation4], 128
    $region45: #{mlp_forward.1} parent=1 // pred_fallthru
      _
    %653 = vsyncpa [#allocation3], 1
    %654 = vsyncpa [#allocation6], 1
    %655 = vsyncpa [#allocation4], 1

</llo_original>
